<compile_context>
chip_gen: v6e
topology: v6e:2x2x1
jax: 0.10.0
libtpu: 0.0.40
codegen_flags: <defaults>
</compile_context>

<pallas_src>
import math

import jax
import jax.numpy as jnp
from jax.experimental import pallas as pl
from jax.experimental.pallas import tpu as pltpu

_LANE = 512                              # lane width, multiple of 128 -> unmasked vst
_TARGET_BLOCK_BYTES = 4 * 1024 * 1024    # per operand, per pipeline buffer
_MIN_GRID_STEPS = 8                      # keep the pipeline busy even on small inputs
_PALLAS_MIN_BYTES = 256 * 1024           # below this, XLA's fused add wins
_VMEM_LIMIT_BYTES = 32 * 1024 * 1024     # 3 operands x 2 bufs x 4 MiB = 24 MiB + headroom


def _sublane(dtype) -> int:
    # Packed sublane multiple: f32 -> 8, bf16/f16 -> 16, int8/fp8 -> 32.
    return max(8, 32 // jnp.dtype(dtype).itemsize)


def _round_up(x: int, m: int) -> int:
    return ((x + m - 1) // m) * m


def _add_kernel(a_ref, b_ref, o_ref):
    # Pure VPU elementwise add on one (block_rows, _LANE) tile.
    o_ref[...] = a_ref[...] + b_ref[...]


def _pallas_add_2d(a2: jax.Array, b2: jax.Array) -> jax.Array:
    """Elementwise add of two (rows, _LANE) slabs via a tiled, pipelined kernel."""
    rows, lane = a2.shape
    itemsize = jnp.dtype(a2.dtype).itemsize
    sub = _sublane(a2.dtype)

    # Byte-budgeted block, but never fewer than ~_MIN_GRID_STEPS grid steps.
    budget_rows = max(sub, (_TARGET_BLOCK_BYTES // (lane * itemsize)) // sub * sub)
    split_rows = max(sub, _round_up(pl.cdiv(rows, _MIN_GRID_STEPS), sub))
    block_rows = min(budget_rows, split_rows)
    if rows < block_rows:
        # Tiny input: one full-extent block (full-dim sublane block is always legal).
        block_rows = rows

    grid = (pl.cdiv(rows, block_rows),)

    return pl.pallas_call(
        _add_kernel,
        out_shape=jax.ShapeDtypeStruct((rows, lane), a2.dtype),
        grid=grid,
        in_specs=[
            pl.BlockSpec((block_rows, lane), lambda i: (i, 0)),
            pl.BlockSpec((block_rows, lane), lambda i: (i, 0)),
        ],
        out_specs=pl.BlockSpec((block_rows, lane), lambda i: (i, 0)),
        compiler_params=pltpu.CompilerParams(
            # Independent tiles -> shard the loop across both TensorCores on v7x.
            dimension_semantics=("parallel",),
            vmem_limit_bytes=_VMEM_LIMIT_BYTES,
        ),
        cost_estimate=pl.CostEstimate(
            flops=rows * lane,
            transcendentals=0,
            bytes_accessed=3 * rows * lane * itemsize,
        ),
    )(a2, b2)


def model3_add(a: jax.Array, b: jax.Array, *, force_pallas: bool = False) -> jax.Array:
    """Model3(elementwise Add) forward: returns a + b, shape/dtype preserved."""
    if a.shape != b.shape or a.dtype != b.dtype:
        # TODO(synk): broadcasting / mixed-dtype elementwise adds fall back to XLA.
        return a + b

    shape = a.shape
    total = math.prod(shape) if shape else 1
    nbytes = total * jnp.dtype(a.dtype).itemsize

    # For tiny tensors the pallas_call custom-call overhead dominates the add.
    if nbytes < _PALLAS_MIN_BYTES and not force_pallas:
        return a + b

    a_flat = a.reshape(total)
    b_flat = b.reshape(total)

    main = (total // _LANE) * _LANE      # lane-divisible prefix handled by Pallas
    tail = total - main                  # < _LANE elements, handled by plain jnp

    if main == 0:
        return a + b

    rows = main // _LANE
    if tail == 0:
        # Common case: pure reshape (free), no padding, no slicing, no concat.
        out_main = _pallas_add_2d(a_flat.reshape(rows, _LANE),
                                  b_flat.reshape(rows, _LANE))
        return out_main.reshape(shape)

    # Ragged w.r.t. the lane width: Pallas on the prefix, jnp on the short tail.
    out_main = _pallas_add_2d(a_flat[:main].reshape(rows, _LANE),
                              b_flat[:main].reshape(rows, _LANE))
    out_tail = a_flat[main:] + b_flat[main:]
    out_flat = jnp.concatenate([out_main.reshape(main), out_tail])
    return out_flat.reshape(shape)


if __name__ == "__main__":
    key = jax.random.PRNGKey(0)
    k1, k2 = jax.random.split(key)

    # Small NCHW tensors consistent with the test's conv-style shapes.
    x1 = jax.random.normal(k1, (2, 4, 16, 16), dtype=jnp.float32)
    x2 = jax.random.normal(k2, (2, 4, 16, 16), dtype=jnp.float32)
    out = jax.block_until_ready(model3_add(x1, x2, force_pallas=True))
    assert out.shape == (2, 4, 16, 16)
    assert jnp.allclose(out, x1 + x2, atol=1e-6, rtol=1e-6)

    # Ragged shape (total not a multiple of 512): exercises Pallas prefix +
    # jnp tail path and the non-divisible-grid boundary masking.
    y1 = jax.random.normal(k1, (2, 3, 33, 33), dtype=jnp.float32)
    y2 = jax.random.normal(k2, (2, 3, 33, 33), dtype=jnp.float32)
    out_r = jax.block_until_ready(model3_add(y1, y2, force_pallas=True))
    assert jnp.allclose(out_r, y1 + y2, atol=1e-6, rtol=1e-6)

    # bf16 path: exercises dtype-aware sublane rounding (16 for bf16).
    z1 = x1.astype(jnp.bfloat16)
    z2 = x2.astype(jnp.bfloat16)
    out_b = jax.block_until_ready(model3_add(z1, z2, force_pallas=True))
    assert jnp.allclose(out_b.astype(jnp.float32), (z1 + z2).astype(jnp.float32),
                        atol=1e-2, rtol=1e-2)

    # Medium-sized input: multi-step pipelined grid (no force needed).
    w1 = jax.random.normal(k1, (8, 64, 56, 56), dtype=jnp.float32)
    w2 = jax.random.normal(k2, (8, 64, 56, 56), dtype=jnp.float32)
    out_w = jax.block_until_ready(model3_add(w1, w2))
    assert jnp.allclose(out_w, w1 + w2, atol=1e-6, rtol=1e-6)

    print("KERNEL_OK")
</pallas_src>

<mosaic_0001>
module attributes {stable_mosaic.version = 11 : i64} {
  func.func @_add_kernel(%arg0: i32, %arg1: memref<4x512xf32, #tpu.memory_space<vmem>>, %arg2: memref<4x512xf32, #tpu.memory_space<vmem>>, %arg3: memref<4x512xf32, #tpu.memory_space<vmem>>) attributes {dimension_semantics = [#tpu.dimension_semantics<parallel>], iteration_bounds = array<i64: 1>, scalar_prefetch = 0 : i64, scratch_operands = 0 : i64, tpu.core_type = #tpu.core_type<tc>, window_params = [{transform_indices = @transform_0, window_bounds = array<i64: 4, 512>}, {transform_indices = @transform_1, window_bounds = array<i64: 4, 512>}, {transform_indices = @transform_2, window_bounds = array<i64: 4, 512>}]} {
    %c0 = arith.constant 0 : index
    %c0_0 = arith.constant 0 : index
    %0 = vector.load %arg1[%c0, %c0_0] : memref<4x512xf32, #tpu.memory_space<vmem>>, vector<4x512xf32>
    %c0_1 = arith.constant 0 : index
    %c0_2 = arith.constant 0 : index
    %1 = vector.load %arg2[%c0_1, %c0_2] : memref<4x512xf32, #tpu.memory_space<vmem>>, vector<4x512xf32>
    %2 = arith.addf %0, %1 : vector<4x512xf32>
    %c0_3 = arith.constant 0 : index
    %c0_4 = arith.constant 0 : index
    %3 = vector.load %arg3[%c0_3, %c0_4] : memref<4x512xf32, #tpu.memory_space<vmem>>, vector<4x512xf32>
    tpu.vector_store %arg3[%c0_3, %c0_4], %2 {strides = array<i32>} : memref<4x512xf32, #tpu.memory_space<vmem>>, vector<4x512xf32>,
    return
  }
  func.func @transform_0(%arg0: i32) -> (i32, i32) {
    %c0_i32 = arith.constant 0 : i32
    %c0_i32_0 = arith.constant 0 : i32
    return %arg0, %c0_i32 : i32, i32
  }
  func.func @transform_1(%arg0: i32) -> (i32, i32) {
    %c0_i32 = arith.constant 0 : i32
    %c0_i32_0 = arith.constant 0 : i32
    return %arg0, %c0_i32 : i32, i32
  }
  func.func @transform_2(%arg0: i32) -> (i32, i32) {
    %c0_i32 = arith.constant 0 : i32
    %c0_i32_0 = arith.constant 0 : i32
    return %arg0, %c0_i32 : i32, i32
  }
}

</mosaic_0001>

<llo_original>
// kernel: tpu_custom_call.1
$region0: #{tpu_custom_call.1}
  #allocation0 [shape = 'u32[]', space=smem, size = 0x4, offset = 0x4, fixed_abs, tag = 'smem constant byte address 0x4 - core index']
  #allocation1 [shape = 'u32[144,128]{1,0:T(1,128)}', space=vmem, size = 0x12000, scoped, tag = 'internal scratch']
  %s0 = inlined_call_operand.hbm [shape: f32[4,512], index: 0, kind: input, shape index: {}]
  %s1 = inlined_call_operand.hbm [shape: f32[4,512], index: 1, kind: input, shape index: {}]
  %s2 = inlined_call_operand.hbm [shape: f32[4,512], index: 2, kind: output, shape index: {}]
  %s3 = sld [smem:[#allocation0]]
  $region26: #{tpu_custom_call.1} parent=0
    _
  %s5 = ssub.s32 1, %s3
  %s6 = scalar_select 0, %s5, %s3
  $region1: #{tpu_custom_call.1} parent=0
    #allocation2 [shape = 'u8[8192]{0}', space=vmem, size = 0x2000, scoped, tag = 'input window, operand 0, single buffered']
    #allocation3 [shape = 's32[1]{0}', space=sflag, size = 0x4, scoped, tag = 'scoped memory for tpu_custom_call.1']
    #allocation4 [shape = 's32[1]{0}', space=sflag, size = 0x4, scoped, tag = 'scoped memory for tpu_custom_call.1']
    #allocation5 [shape = 'u8[8192]{0}', space=vmem, size = 0x2000, scoped, tag = 'input window, operand 1, single buffered']
    #allocation6 [shape = 's32[1]{0}', space=sflag, size = 0x4, scoped, tag = 'scoped memory for tpu_custom_call.1']
    #allocation7 [shape = 'u8[8192]{0}', space=vmem, size = 0x2000, scoped, tag = 'output window, operand 0, single buffered']
    %7 = vsyncpa [#allocation3], 0
    %8 = vsyncpa [#allocation6], 0
    %9 = vsyncpa [#allocation4], 0
    // Predicated region
    $region2: #{tpu_custom_call.1} parent=1 // pred_check
      _
    $region3: #{tpu_custom_call.1} parent=1 // pred_check_branch
      %11 = sbr.rel (0) target = $region5
    $region4: #{tpu_custom_call.1} parent=1 // pred_region
      %s13 = ssub.s32 256, 256
      %14 = vsyncadd [#allocation3], %s13
      %s16 = sshll.u32 [#allocation2], 4
      %s17 = int_to_ptr.vmem [resolvable:$true] %s16
      %19 = dma.hbm_to_vmem [thread:$0]  %s0, 256, %s17, [#allocation3]
    $region5: #{tpu_custom_call.1} parent=1 // pred_fallthru
      _
    // Predicated region
    $region6: #{tpu_custom_call.1} parent=1 // pred_check
      _
    $region7: #{tpu_custom_call.1} parent=1 // pred_check_branch
      %21 = sbr.rel (0) target = $region9
    $region8: #{tpu_custom_call.1} parent=1 // pred_region
      %s23 = ssub.s32 256, 256
      %24 = vsyncadd [#allocation6], %s23
      %s26 = sshll.u32 [#allocation5], 4
      %s27 = int_to_ptr.vmem [resolvable:$true] %s26
      %29 = dma.hbm_to_vmem [thread:$0]  %s1, 256, %s27, [#allocation6]
    $region9: #{tpu_custom_call.1} parent=1 // pred_fallthru
      _
    // Predicated region
    $region10: #{tpu_custom_call.1} parent=1 // pred_check
      _
    $region11: #{tpu_custom_call.1} parent=1 // pred_check_branch
      %31 = sbr.rel (0) target = $region13
    $region12: #{tpu_custom_call.1} parent=1 // pred_region
      %32 = dma.done [#allocation3], 256
    $region13: #{tpu_custom_call.1} parent=1 // pred_fallthru
      _
    // Predicated region
    $region14: #{tpu_custom_call.1} parent=1 // pred_check
      _
    $region15: #{tpu_custom_call.1} parent=1 // pred_check_branch
      %34 = sbr.rel (0) target = $region17
    $region16: #{tpu_custom_call.1} parent=1 // pred_region
      %35 = dma.done [#allocation6], 256
    $region17: #{tpu_custom_call.1} parent=1 // pred_fallthru
      _
    %v36 = vld [vmem:[#allocation2] sm:$0xff]
    %v37 = vld [vmem:[#allocation2 + $0x8] sm:$0xff]
    %v38 = vld [vmem:[#allocation5] sm:$0xff]
    %v39 = vld [vmem:[#allocation5 + $0x8] sm:$0xff]
    %v40 = vadd.f32 %v36, %v38
    %v41 = vadd.f32 %v37, %v39
    %42 = vst [vmem:[#allocation7] sm:$0xff] %v40
    %43 = vst [vmem:[#allocation7 + $0x8] sm:$0xff] %v41
    // Predicated region
    $region18: #{tpu_custom_call.1} parent=1 // pred_check
      _
    $region19: #{tpu_custom_call.1} parent=1 // pred_check_branch
      %45 = sbr.rel (0) target = $region21
    $region20: #{tpu_custom_call.1} parent=1 // pred_region
      %s47 = ssub.s32 256, 256
      %48 = vsyncadd [#allocation4], %s47
      %s50 = sshll.u32 [#allocation7], 4
      %s51 = int_to_ptr.vmem [resolvable:$true] %s50
      %53 = dma.vmem_to_hbm [thread:$0]  %s51, 256, %s2, [#allocation4]
    $region21: #{tpu_custom_call.1} parent=1 // pred_fallthru
      _
    // Predicated region
    $region22: #{tpu_custom_call.1} parent=1 // pred_check
      _
    $region23: #{tpu_custom_call.1} parent=1 // pred_check_branch
      %55 = sbr.rel (0) target = $region25
    $region24: #{tpu_custom_call.1} parent=1 // pred_region
      %56 = dma.done [#allocation4], 256
    $region25: #{tpu_custom_call.1} parent=1 // pred_fallthru
      _
    %57 = vsyncpa [#allocation3], 1
    %58 = vsyncpa [#allocation6], 1
    %59 = vsyncpa [#allocation4], 1

</llo_original>
